<compile_context>
chip_gen: v5e
topology: v5e:2x2
jax: 0.10.0
libtpu: 0.0.40
codegen_flags: <defaults>
</compile_context>

<pallas_src>
import jax
import jax.numpy as jnp
from jax.experimental import pallas as pl
from jax.experimental.pallas import tpu as pltpu

Z_DIM = 64
HIDDEN = 256
IMAGE_DIMS = 28 * 28 * 1          # 784
N_PAD = 896                        # 7 * 128, lane-dense padded output width


def generator_kernel(x_ref, w1_ref, b1_ref, w2_ref, b2_ref, o_ref):
    # Linear 1: (BM, 64)bf16 @ (64, 256)bf16 -> f32, + b1 (f32)
    h = jnp.dot(x_ref[...], w1_ref[...], preferred_element_type=jnp.float32)
    h = h + b1_ref[...]
    # LeakyReLU(0.1) in f32
    h = jnp.where(h > 0, h, 0.1 * h)
    # Linear 2: (BM, 256)bf16 @ (256, 896)bf16 -> f32, + b2 (f32)
    y = jnp.dot(h.astype(jnp.bfloat16), w2_ref[...],
                preferred_element_type=jnp.float32)
    y = y + b2_ref[...]
    # Tanh, stored f32 (lane-dense 896-wide store)
    o_ref[...] = jnp.tanh(y).astype(o_ref.dtype)


def _choose_block_m(B: int) -> int:
    # MXU-shaped tiles for large batches; keep >=2 grid steps where possible so
    # dimension_semantics=("parallel",) can shard across both v7x TensorCores.
    if B >= 1024:
        return 512
    if B >= 512:
        return 256
    if B >= 256:
        return 128
    # Small batch: a single tile rounded up to the 8-row sublane granule.
    return max(8, ((B + 7) // 8) * 8)


@jax.jit
def generator_forward(x, w1, b1, w2, b2):
    B = x.shape[0]
    block_m = _choose_block_m(B)
    Bp = ((B + block_m - 1) // block_m) * block_m

    # bf16 activations/weights (MXU-native), f32 biases. Pad batch to a tile
    # multiple and the output/W2/b2 N-dim to 896 lanes.
    xb = x.astype(jnp.bfloat16)
    if Bp != B:
        xb = jnp.pad(xb, ((0, Bp - B), (0, 0)))
    w1b = w1.astype(jnp.bfloat16)
    w2b = jnp.pad(w2.astype(jnp.bfloat16),
                  ((0, 0), (0, N_PAD - IMAGE_DIMS)))
    b1f = b1.astype(jnp.float32).reshape(1, HIDDEN)
    b2f = jnp.pad(b2.astype(jnp.float32).reshape(1, IMAGE_DIMS),
                  ((0, 0), (0, N_PAD - IMAGE_DIMS)))

    out = pl.pallas_call(
        generator_kernel,
        out_shape=jax.ShapeDtypeStruct((Bp, N_PAD), jnp.float32),
        grid_spec=pltpu.PrefetchScalarGridSpec(
            num_scalar_prefetch=0,
            grid=(Bp // block_m,),
            in_specs=[
                pl.BlockSpec((block_m, Z_DIM), lambda i: (i, 0)),   # x tile
                pl.BlockSpec((Z_DIM, HIDDEN), lambda i: (0, 0)),    # W1 (resident)
                pl.BlockSpec((1, HIDDEN), lambda i: (0, 0)),        # b1 (resident)
                pl.BlockSpec((HIDDEN, N_PAD), lambda i: (0, 0)),    # W2 (resident)
                pl.BlockSpec((1, N_PAD), lambda i: (0, 0)),         # b2 (resident)
            ],
            out_specs=pl.BlockSpec((block_m, N_PAD), lambda i: (i, 0)),
        ),
        compiler_params=pltpu.CompilerParams(
            dimension_semantics=("parallel",),
            vmem_limit_bytes=32 * 1024 * 1024,  # headroom above the v5e 16 MiB default
        ),
    )(xb, w1b, b1f, w2b, b2f)

    return out[:B, :IMAGE_DIMS]


def init_params(key):
    """Deterministic init mimicking PyTorch nn.Linear: U(-1/sqrt(fan_in), 1/sqrt(fan_in)).
    Weights stored pre-transposed as (in, out)."""
    k1, k2, k3, k4 = jax.random.split(key, 4)
    bound1 = 1.0 / jnp.sqrt(Z_DIM)
    bound2 = 1.0 / jnp.sqrt(HIDDEN)
    w1 = jax.random.uniform(k1, (Z_DIM, HIDDEN), jnp.float32, -bound1, bound1)
    b1 = jax.random.uniform(k2, (1, HIDDEN), jnp.float32, -bound1, bound1)
    w2 = jax.random.uniform(k3, (HIDDEN, IMAGE_DIMS), jnp.float32, -bound2, bound2)
    b2 = jax.random.uniform(k4, (1, IMAGE_DIMS), jnp.float32, -bound2, bound2)
    return w1, b1, w2, b2


def reference_forward_bf16(x, w1, b1, w2, b2):
    """Reference with the same bf16 casts as the kernel (f32 accumulation)."""
    h = jnp.dot(x.astype(jnp.bfloat16), w1.astype(jnp.bfloat16),
                preferred_element_type=jnp.float32) + b1
    h = jnp.where(h > 0, h, 0.1 * h)
    y = jnp.dot(h.astype(jnp.bfloat16), w2.astype(jnp.bfloat16),
                preferred_element_type=jnp.float32) + b2
    return jnp.tanh(y)


def reference_forward_f32(x, w1, b1, w2, b2):
    h = x @ w1 + b1
    h = jnp.where(h > 0, h, 0.1 * h)
    return jnp.tanh(h @ w2 + b2)


if __name__ == "__main__":
    key = jax.random.PRNGKey(0)
    kx, kp = jax.random.split(key)

    B = 12  # small batch, deliberately not a multiple of 8 to exercise padding
    x = jax.random.normal(kx, (B, Z_DIM), jnp.float32)  # latent z
    w1, b1, w2, b2 = init_params(kp)

    out = generator_forward(x, w1, b1, w2, b2)
    out = jax.block_until_ready(out)
    assert out.shape == (B, IMAGE_DIMS), out.shape

    # Tight check vs a bf16-matched reference.
    ref = reference_forward_bf16(x, w1, b1, w2, b2)
    err = float(jnp.max(jnp.abs(out - ref)))
    assert err < 1e-4, err

    # Loose sanity check vs the pure-f32 PyTorch-equivalent math.
    ref32 = reference_forward_f32(x, w1, b1, w2, b2)
    err32 = float(jnp.max(jnp.abs(out - ref32)))
    assert err32 < 5e-2, err32

    print("KERNEL_OK")
</pallas_src>

<mosaic_0001>
module attributes {stable_mosaic.version = 11 : i64} {
  func.func @generator_kernel(%arg0: i32, %arg1: memref<16x64xbf16, #tpu.memory_space<vmem>>, %arg2: memref<64x256xbf16, #tpu.memory_space<vmem>>, %arg3: memref<1x256xf32, #tpu.memory_space<vmem>>, %arg4: memref<256x896xbf16, #tpu.memory_space<vmem>>, %arg5: memref<1x896xf32, #tpu.memory_space<vmem>>, %arg6: memref<16x896xf32, #tpu.memory_space<vmem>>) attributes {dimension_semantics = [#tpu.dimension_semantics<parallel>], iteration_bounds = array<i64: 1>, scalar_prefetch = 0 : i64, scratch_operands = 0 : i64, tpu.core_type = #tpu.core_type<tc>, window_params = [{transform_indices = @transform_0, window_bounds = array<i64: 16, 64>}, {pipeline_mode = #tpu.pipeline_mode<synchronous>, transform_indices = @transform_1, window_bounds = array<i64: 64, 256>}, {pipeline_mode = #tpu.pipeline_mode<synchronous>, transform_indices = @transform_2, window_bounds = array<i64: 1, 256>}, {pipeline_mode = #tpu.pipeline_mode<synchronous>, transform_indices = @transform_3, window_bounds = array<i64: 256, 896>}, {pipeline_mode = #tpu.pipeline_mode<synchronous>, transform_indices = @transform_4, window_bounds = array<i64: 1, 896>}, {transform_indices = @transform_5, window_bounds = array<i64: 16, 896>}]} {
    %c0 = arith.constant 0 : index
    %c0_0 = arith.constant 0 : index
    %0 = vector.load %arg1[%c0, %c0_0] : memref<16x64xbf16, #tpu.memory_space<vmem>>, vector<16x64xbf16>
    %c0_1 = arith.constant 0 : index
    %c0_2 = arith.constant 0 : index
    %1 = vector.load %arg2[%c0_1, %c0_2] : memref<64x256xbf16, #tpu.memory_space<vmem>>, vector<64x256xbf16>
    %cst = arith.constant dense<0.000000e+00> : vector<16x256xf32>
    %2 = tpu.matmul %0, %1, %cst {dimension_numbers = #tpu.dot_dimension_numbers<[1], [0], [0], [1], [0, 0, 1, 1], [], []>} : vector<16x64xbf16>, vector<64x256xbf16>, vector<16x256xf32> -> vector<16x256xf32>
    %c0_3 = arith.constant 0 : index
    %c0_4 = arith.constant 0 : index
    %3 = vector.load %arg3[%c0_3, %c0_4] : memref<1x256xf32, #tpu.memory_space<vmem>>, vector<1x256xf32>
    %4 = vector.broadcast %3 : vector<1x256xf32> to vector<16x256xf32>
    %5 = arith.addf %2, %4 : vector<16x256xf32>
    %cst_5 = arith.constant 0.000000e+00 : f32
    %6 = vector.broadcast %cst_5 : f32 to vector<16x256xf32>
    %7 = arith.cmpf ogt, %5, %6 : vector<16x256xf32>
    %cst_6 = arith.constant 1.000000e-01 : f32
    %8 = vector.broadcast %cst_6 : f32 to vector<16x256xf32>
    %9 = arith.mulf %8, %5 : vector<16x256xf32>
    %10 = arith.select %7, %5, %9 : vector<16x256xi1>, vector<16x256xf32>
    %11 = arith.truncf %10 : vector<16x256xf32> to vector<16x256xbf16>
    %c0_7 = arith.constant 0 : index
    %c0_8 = arith.constant 0 : index
    %12 = vector.load %arg4[%c0_7, %c0_8] : memref<256x896xbf16, #tpu.memory_space<vmem>>, vector<256x896xbf16>
    %cst_9 = arith.constant dense<0.000000e+00> : vector<16x896xf32>
    %13 = tpu.matmul %11, %12, %cst_9 {dimension_numbers = #tpu.dot_dimension_numbers<[1], [0], [0], [1], [0, 0, 1, 1], [], []>} : vector<16x256xbf16>, vector<256x896xbf16>, vector<16x896xf32> -> vector<16x896xf32>
    %c0_10 = arith.constant 0 : index
    %c0_11 = arith.constant 0 : index
    %14 = vector.load %arg5[%c0_10, %c0_11] : memref<1x896xf32, #tpu.memory_space<vmem>>, vector<1x896xf32>
    %15 = vector.broadcast %14 : vector<1x896xf32> to vector<16x896xf32>
    %16 = arith.addf %13, %15 : vector<16x896xf32>
    %17 = math.tanh %16 : vector<16x896xf32>
    %c0_12 = arith.constant 0 : index
    %c0_13 = arith.constant 0 : index
    %18 = vector.load %arg6[%c0_12, %c0_13] : memref<16x896xf32, #tpu.memory_space<vmem>>, vector<16x896xf32>
    tpu.vector_store %arg6[%c0_12, %c0_13], %17 {strides = array<i32>} : memref<16x896xf32, #tpu.memory_space<vmem>>, vector<16x896xf32>,
    return
  }
  func.func @transform_0(%arg0: i32) -> (i32, i32) {
    %c0_i32 = arith.constant 0 : i32
    %c0_i32_0 = arith.constant 0 : i32
    return %arg0, %c0_i32 : i32, i32
  }
  func.func @transform_1(%arg0: i32) -> (i32, i32) {
    %c0_i32 = arith.constant 0 : i32
    %c0_i32_0 = arith.constant 0 : i32
    %c0_i32_1 = arith.constant 0 : i32
    return %c0_i32, %c0_i32_0 : i32, i32
  }
  func.func @transform_2(%arg0: i32) -> (i32, i32) {
    %c0_i32 = arith.constant 0 : i32
    %c0_i32_0 = arith.constant 0 : i32
    %c0_i32_1 = arith.constant 0 : i32
    return %c0_i32, %c0_i32_0 : i32, i32
  }
  func.func @transform_3(%arg0: i32) -> (i32, i32) {
    %c0_i32 = arith.constant 0 : i32
    %c0_i32_0 = arith.constant 0 : i32
    %c0_i32_1 = arith.constant 0 : i32
    return %c0_i32, %c0_i32_0 : i32, i32
  }
  func.func @transform_4(%arg0: i32) -> (i32, i32) {
    %c0_i32 = arith.constant 0 : i32
    %c0_i32_0 = arith.constant 0 : i32
    %c0_i32_1 = arith.constant 0 : i32
    return %c0_i32, %c0_i32_0 : i32, i32
  }
  func.func @transform_5(%arg0: i32) -> (i32, i32) {
    %c0_i32 = arith.constant 0 : i32
    %c0_i32_0 = arith.constant 0 : i32
    return %arg0, %c0_i32 : i32, i32
  }
}

</mosaic_0001>

<llo_original>
// kernel: generator_forward.1
$region0: #{generator_forward.1}
  #allocation0 [shape = 'u32[]', space=smem, size = 0x4, offset = 0x4, fixed_abs, tag = 'smem constant byte address 0x4 - core index']
  #allocation1 [shape = 'u32[72,128]{1,0:T(1,128)}', space=vmem, size = 0x9000, scoped, tag = 'internal scratch']
  %s0 = inlined_call_operand.vmem [shape: bf16[16,64], index: 0, kind: input, shape index: {}]
  %s1 = inlined_call_operand.vmem [shape: bf16[64,256], index: 1, kind: input, shape index: {}]
  %s2 = inlined_call_operand.vmem [shape: f32[1,256], index: 2, kind: input, shape index: {}]
  %s3 = inlined_call_operand.vmem [shape: bf16[256,896], index: 3, kind: input, shape index: {}]
  %s4 = inlined_call_operand.vmem [shape: f32[1,896], index: 4, kind: input, shape index: {}]
  %s5 = inlined_call_operand.hbm [shape: f32[16,896], index: 5, kind: output, shape index: {}]
  %s6 = sld [smem:[#allocation0]]
  $region30: #{generator_forward.1} parent=0
    _
  %s8 = ssub.s32 1, %s6
  %s9 = scalar_select 0, %s8, %s6
  $region1: #{generator_forward.1} parent=0
    #allocation2 [shape = 'u8[57344]{0}', space=vmem, size = 0xe000, scoped, tag = 'output window, operand 0, single buffered']
    #allocation3 [shape = 's32[1]{0}', space=sflag, size = 0x4, scoped, tag = 'scoped memory for generator_forward.1']
    %10 = vsyncpa [#allocation3], 0
    // Predicated region
    $region2: #{generator_forward.1} parent=1 // pred_check
      _
    $region3: #{generator_forward.1} parent=1 // pred_check_branch
      %12 = sbr.rel (0) target = $region5
    $region4: #{generator_forward.1} parent=1 // pred_region
      _
    $region5: #{generator_forward.1} parent=1 // pred_fallthru
      _
    // Predicated region
    $region6: #{generator_forward.1} parent=1 // pred_check
      _
    $region7: #{generator_forward.1} parent=1 // pred_check_branch
      %14 = sbr.rel (0) target = $region9
    $region8: #{generator_forward.1} parent=1 // pred_region
      _
    $region9: #{generator_forward.1} parent=1 // pred_fallthru
      _
    // Predicated region
    $region10: #{generator_forward.1} parent=1 // pred_check
      _
    $region11: #{generator_forward.1} parent=1 // pred_check_branch
      %16 = sbr.rel (0) target = $region13
    $region12: #{generator_forward.1} parent=1 // pred_region
      _
    $region13: #{generator_forward.1} parent=1 // pred_fallthru
      _
    // Predicated region
    $region14: #{generator_forward.1} parent=1 // pred_check
      _
    $region15: #{generator_forward.1} parent=1 // pred_check_branch
      %18 = sbr.rel (0) target = $region17
    $region16: #{generator_forward.1} parent=1 // pred_region
      _
    $region17: #{generator_forward.1} parent=1 // pred_fallthru
      _
    // Predicated region
    $region18: #{generator_forward.1} parent=1 // pred_check
      _
    $region19: #{generator_forward.1} parent=1 // pred_check_branch
      %20 = sbr.rel (0) target = $region21
    $region20: #{generator_forward.1} parent=1 // pred_region
      _
    $region21: #{generator_forward.1} parent=1 // pred_fallthru
      _
    %v22 = vld [vmem:[%s0] sm:$0xf]
    %v23 = vld [vmem:[%s0 + $0x4] sm:$0xf]
    %v24 = vld [vmem:[%s1] sm:$0xff]
    %v25 = vld [vmem:[%s1 + $0x8] sm:$0xff]
    %v26 = vld [vmem:[%s1 + $0x10] sm:$0xff]
    %v27 = vld [vmem:[%s1 + $0x18] sm:$0xff]
    %v28 = vld [vmem:[%s1 + $0x20] sm:$0xff]
    %v29 = vld [vmem:[%s1 + $0x28] sm:$0xff]
    %v30 = vld [vmem:[%s1 + $0x30] sm:$0xff]
    %v31 = vld [vmem:[%s1 + $0x38] sm:$0xff]
    %v32 = vld [vmem:[%s2] sm:$0x3]
    %v34 = vperm.slane %v32, 0
    %v35 = vperm.slane %v32, 1
    %v40 = vunpack.c.l.b16 %v22
    %v41 = vunpack.c.l.b16 %v23
    %v42 = vpack.c.b16 %v41, %v40
    %v51 = vunpack.c.l.b16 %v24
    %v52 = vunpack.c.h.b16 %v24
    %v53 = vunpack.c.l.b16 %v25
    %v54 = vunpack.c.h.b16 %v25
    %v55 = vunpack.c.l.b16 %v26
    %v56 = vunpack.c.h.b16 %v26
    %v57 = vunpack.c.l.b16 %v27
    %v58 = vunpack.c.h.b16 %v27
    %v59 = vunpack.c.l.b16 %v28
    %v60 = vunpack.c.h.b16 %v28
    %v61 = vunpack.c.l.b16 %v29
    %v62 = vunpack.c.h.b16 %v29
    %v63 = vunpack.c.l.b16 %v30
    %v64 = vunpack.c.h.b16 %v30
    %v65 = vunpack.c.l.b16 %v31
    %v66 = vunpack.c.h.b16 %v31
    %v67 = vpack.c.b16 %v53, %v51
    %v68 = vpack.c.b16 %v54, %v52
    %v69 = vpack.c.b16 %v57, %v55
    %v70 = vpack.c.b16 %v58, %v56
    %v71 = vpack.c.b16 %v61, %v59
    %v72 = vpack.c.b16 %v62, %v60
    %v73 = vpack.c.b16 %v65, %v63
    %v74 = vpack.c.b16 %v66, %v64
    %vm83 = vcmask 523264
    %v85 = vsel %vm83, %v42, 0
    %87 = vmatpush.bf16.msra.mxu0 0
    %88 = vmatpush.bf16.msra.mxu0 0
    %89 = vmatpush.bf16.msra.mxu0 0
    %90 = vmatpush.bf16.msra.mxu0 0
    %91 = vmatpush.bf16.msra.mxu0 %v73
    %92 = vmatpush.bf16.msra.mxu0 %v71
    %93 = vmatpush.bf16.msra.mxu0 %v69
    %94 = vmatpush.bf16.msra.mxu0 %v67
    %95 = vmatmul.bf16.gmra.mxu0 %v85
    %v96 = vpop.f32.mrf.mxu0
    %v97 = vadd.f32 %v34, %v96
    %v98 = vpop.f32.mrf.mxu0
    %v99 = vadd.f32 %v34, %v98
    %100 = vdwg.mxu0
    %101 = vmatpush.bf16.msra.mxu0 0
    %102 = vmatpush.bf16.msra.mxu0 0
    %103 = vmatpush.bf16.msra.mxu0 0
    %104 = vmatpush.bf16.msra.mxu0 0
    %105 = vmatpush.bf16.msra.mxu0 %v74
    %106 = vmatpush.bf16.msra.mxu0 %v72
    %107 = vmatpush.bf16.msra.mxu0 %v70
    %108 = vmatpush.bf16.msra.mxu0 %v68
    %109 = vmatmul.bf16.gmra.mxu0 %v85
    %v110 = vpop.f32.mrf.mxu0
    %v111 = vadd.f32 %v35, %v110
    %v112 = vpop.f32.mrf.mxu0
    %v113 = vadd.f32 %v35, %v112
    %114 = vdwg.mxu0
    %vm115 = vcmp.gt.f32.partialorder %v97, 0.0
    %vm116 = vcmp.gt.f32.partialorder %v111, 0.0
    %vm117 = vcmp.gt.f32.partialorder %v99, 0.0
    %vm118 = vcmp.gt.f32.partialorder %v113, 0.0
    %v119 = vmul.f32 %v97, 0.1
    %v120 = vmul.f32 %v111, 0.1
    %v121 = vmul.f32 %v99, 0.1
    %v122 = vmul.f32 %v113, 0.1
    %v123 = vsel %vm115, %v97, %v119
    %v124 = vsel %vm116, %v111, %v120
    %v125 = vsel %vm117, %v99, %v121
    %v126 = vsel %vm118, %v113, %v122
    %v127 = vpack.c.bf16 %v125, %v123
    %v128 = vpack.c.bf16 %v126, %v124
    %v129 = vld [vmem:[%s3] sm:$0xff]
    %v130 = vld [vmem:[%s3 + $0x8] sm:$0xff]
    %v131 = vld [vmem:[%s3 + $0x10] sm:$0xff]
    %v132 = vld [vmem:[%s3 + $0x18] sm:$0xf]
    %v133 = vld [vmem:[%s3 + $0x1c] sm:$0xff]
    %v134 = vld [vmem:[%s3 + $0x24] sm:$0xff]
    %v135 = vld [vmem:[%s3 + $0x2c] sm:$0xff]
    %v136 = vld [vmem:[%s3 + $0x34] sm:$0xf]
    %v137 = vld [vmem:[%s3 + $0x38] sm:$0xff]
    %v138 = vld [vmem:[%s3 + $0x40] sm:$0xff]
    %v139 = vld [vmem:[%s3 + $0x48] sm:$0xff]
    %v140 = vld [vmem:[%s3 + $0x50] sm:$0xf]
    %v141 = vld [vmem:[%s3 + $0x54] sm:$0xff]
    %v142 = vld [vmem:[%s3 + $0x5c] sm:$0xff]
    %v143 = vld [vmem:[%s3 + $0x64] sm:$0xff]
    %v144 = vld [vmem:[%s3 + $0x6c] sm:$0xf]
    %v145 = vld [vmem:[%s3 + $0x70] sm:$0xff]
    %v146 = vld [vmem:[%s3 + $0x78] sm:$0xff]
    %v147 = vld [vmem:[%s3 + $0x80] sm:$0xff]
    %v148 = vld [vmem:[%s3 + $0x88] sm:$0xf]
    %v149 = vld [vmem:[%s3 + $0x8c] sm:$0xff]
    %v150 = vld [vmem:[%s3 + $0x94] sm:$0xff]
    %v151 = vld [vmem:[%s3 + $0x9c] sm:$0xff]
    %v152 = vld [vmem:[%s3 + $0xa4] sm:$0xf]
    %v153 = vld [vmem:[%s3 + $0xa8] sm:$0xff]
    %v154 = vld [vmem:[%s3 + $0xb0] sm:$0xff]
    %v155 = vld [vmem:[%s3 + $0xb8] sm:$0xff]
    %v156 = vld [vmem:[%s3 + $0xc0] sm:$0xf]
    %v157 = vld [vmem:[%s3 + $0xc4] sm:$0xff]
    %v158 = vld [vmem:[%s3 + $0xcc] sm:$0xff]
    %v159 = vld [vmem:[%s3 + $0xd4] sm:$0xff]
    %v160 = vld [vmem:[%s3 + $0xdc] sm:$0xf]
    %v161 = vld [vmem:[%s3 + $0xe0] sm:$0xff]
    %v162 = vld [vmem:[%s3 + $0xe8] sm:$0xff]
    %v163 = vld [vmem:[%s3 + $0xf0] sm:$0xff]
    %v164 = vld [vmem:[%s3 + $0xf8] sm:$0xf]
    %v165 = vld [vmem:[%s3 + $0xfc] sm:$0xff]
    %v166 = vld [vmem:[%s3 + $0x104] sm:$0xff]
    %v167 = vld [vmem:[%s3 + $0x10c] sm:$0xff]
    %v168 = vld [vmem:[%s3 + $0x114] sm:$0xf]
    %v169 = vld [vmem:[%s3 + $0x118] sm:$0xff]
    %v170 = vld [vmem:[%s3 + $0x120] sm:$0xff]
    %v171 = vld [vmem:[%s3 + $0x128] sm:$0xff]
    %v172 = vld [vmem:[%s3 + $0x130] sm:$0xf]
    %v173 = vld [vmem:[%s3 + $0x134] sm:$0xff]
    %v174 = vld [vmem:[%s3 + $0x13c] sm:$0xff]
    %v175 = vld [vmem:[%s3 + $0x144] sm:$0xff]
    %v176 = vld [vmem:[%s3 + $0x14c] sm:$0xf]
    %v177 = vld [vmem:[%s3 + $0x150] sm:$0xff]
    %v178 = vld [vmem:[%s3 + $0x158] sm:$0xff]
    %v179 = vld [vmem:[%s3 + $0x160] sm:$0xff]
    %v180 = vld [vmem:[%s3 + $0x168] sm:$0xf]
    %v181 = vld [vmem:[%s3 + $0x16c] sm:$0xff]
    %v182 = vld [vmem:[%s3 + $0x174] sm:$0xff]
    %v183 = vld [vmem:[%s3 + $0x17c] sm:$0xff]
    %v184 = vld [vmem:[%s3 + $0x184] sm:$0xf]
    %v185 = vld [vmem:[%s3 + $0x188] sm:$0xff]
    %v186 = vld [vmem:[%s3 + $0x190] sm:$0xff]
    %v187 = vld [vmem:[%s3 + $0x198] sm:$0xff]
    %v188 = vld [vmem:[%s3 + $0x1a0] sm:$0xf]
    %v189 = vld [vmem:[%s3 + $0x1a4] sm:$0xff]
    %v190 = vld [vmem:[%s3 + $0x1ac] sm:$0xff]
    %v191 = vld [vmem:[%s3 + $0x1b4] sm:$0xff]
    %v192 = vld [vmem:[%s3 + $0x1bc] sm:$0xf]
    %v193 = vld [vmem:[%s3 + $0x1c0] sm:$0xff]
    %v194 = vld [vmem:[%s3 + $0x1c8] sm:$0xff]
    %v195 = vld [vmem:[%s3 + $0x1d0] sm:$0xff]
    %v196 = vld [vmem:[%s3 + $0x1d8] sm:$0xf]
    %v197 = vld [vmem:[%s3 + $0x1dc] sm:$0xff]
    %v198 = vld [vmem:[%s3 + $0x1e4] sm:$0xff]
    %v199 = vld [vmem:[%s3 + $0x1ec] sm:$0xff]
    %v200 = vld [vmem:[%s3 + $0x1f4] sm:$0xf]
    %v201 = vld [vmem:[%s3 + $0x1f8] sm:$0xff]
    %v202 = vld [vmem:[%s3 + $0x200] sm:$0xff]
    %v203 = vld [vmem:[%s3 + $0x208] sm:$0xff]
    %v204 = vld [vmem:[%s3 + $0x210] sm:$0xf]
    %v205 = vld [vmem:[%s3 + $0x214] sm:$0xff]
    %v206 = vld [vmem:[%s3 + $0x21c] sm:$0xff]
    %v207 = vld [vmem:[%s3 + $0x224] sm:$0xff]
    %v208 = vld [vmem:[%s3 + $0x22c] sm:$0xf]
    %v209 = vld [vmem:[%s3 + $0x230] sm:$0xff]
    %v210 = vld [vmem:[%s3 + $0x238] sm:$0xff]
    %v211 = vld [vmem:[%s3 + $0x240] sm:$0xff]
    %v212 = vld [vmem:[%s3 + $0x248] sm:$0xf]
    %v213 = vld [vmem:[%s3 + $0x24c] sm:$0xff]
    %v214 = vld [vmem:[%s3 + $0x254] sm:$0xff]
    %v215 = vld [vmem:[%s3 + $0x25c] sm:$0xff]
    %v216 = vld [vmem:[%s3 + $0x264] sm:$0xf]
    %v217 = vld [vmem:[%s3 + $0x268] sm:$0xff]
    %v218 = vld [vmem:[%s3 + $0x270] sm:$0xff]
    %v219 = vld [vmem:[%s3 + $0x278] sm:$0xff]
    %v220 = vld [vmem:[%s3 + $0x280] sm:$0xf]
    %v221 = vld [vmem:[%s3 + $0x284] sm:$0xff]
    %v222 = vld [vmem:[%s3 + $0x28c] sm:$0xff]
    %v223 = vld [vmem:[%s3 + $0x294] sm:$0xff]
    %v224 = vld [vmem:[%s3 + $0x29c] sm:$0xf]
    %v225 = vld [vmem:[%s3 + $0x2a0] sm:$0xff]
    %v226 = vld [vmem:[%s3 + $0x2a8] sm:$0xff]
    %v227 = vld [vmem:[%s3 + $0x2b0] sm:$0xff]
    %v228 = vld [vmem:[%s3 + $0x2b8] sm:$0xf]
    %v229 = vld [vmem:[%s3 + $0x2bc] sm:$0xff]
    %v230 = vld [vmem:[%s3 + $0x2c4] sm:$0xff]
    %v231 = vld [vmem:[%s3 + $0x2cc] sm:$0xff]
    %v232 = vld [vmem:[%s3 + $0x2d4] sm:$0xf]
    %v233 = vld [vmem:[%s3 + $0x2d8] sm:$0xff]
    %v234 = vld [vmem:[%s3 + $0x2e0] sm:$0xff]
    %v235 = vld [vmem:[%s3 + $0x2e8] sm:$0xff]
    %v236 = vld [vmem:[%s3 + $0x2f0] sm:$0xf]
    %v237 = vld [vmem:[%s3 + $0x2f4] sm:$0xff]
    %v238 = vld [vmem:[%s3 + $0x2fc] sm:$0xff]
    %v239 = vld [vmem:[%s3 + $0x304] sm:$0xff]
    %v240 = vld [vmem:[%s3 + $0x30c] sm:$0xf]
    %v241 = vld [vmem:[%s3 + $0x310] sm:$0xff]
    %v242 = vld [vmem:[%s3 + $0x318] sm:$0xff]
    %v243 = vld [vmem:[%s3 + $0x320] sm:$0xff]
    %v244 = vld [vmem:[%s3 + $0x328] sm:$0xf]
    %v245 = vld [vmem:[%s3 + $0x32c] sm:$0xff]
    %v246 = vld [vmem:[%s3 + $0x334] sm:$0xff]
    %v247 = vld [vmem:[%s3 + $0x33c] sm:$0xff]
    %v248 = vld [vmem:[%s3 + $0x344] sm:$0xf]
    %v249 = vld [vmem:[%s3 + $0x348] sm:$0xff]
    %v250 = vld [vmem:[%s3 + $0x350] sm:$0xff]
    %v251 = vld [vmem:[%s3 + $0x358] sm:$0xff]
    %v252 = vld [vmem:[%s3 + $0x360] sm:$0xf]
    %v253 = vld [vmem:[%s3 + $0x364] sm:$0xff]
    %v254 = vld [vmem:[%s3 + $0x36c] sm:$0xff]
    %v255 = vld [vmem:[%s3 + $0x374] sm:$0xff]
    %v256 = vld [vmem:[%s3 + $0x37c] sm:$0xf]
    %v257 = vld [vmem:[%s4] sm:$0xff]
    %v259 = vperm.slane %v257, 0
    %v260 = vperm.slane %v257, 1
    %v261 = vperm.slane %v257, 2
    %v262 = vperm.slane %v257, 3
    %v263 = vperm.slane %v257, 4
    %v264 = vperm.slane %v257, 5
    %v265 = vperm.slane %v257, 6
    %v401 = vunpack.c.l.b16 %v129
    %v402 = vunpack.c.h.b16 %v129
    %v403 = vunpack.c.l.b16 %v130
    %v404 = vunpack.c.h.b16 %v130
    %v405 = vunpack.c.l.b16 %v131
    %v406 = vunpack.c.h.b16 %v131
    %v407 = vunpack.c.l.b16 %v132
    %v408 = vunpack.c.l.b16 %v133
    %v409 = vunpack.c.h.b16 %v133
    %v410 = vunpack.c.l.b16 %v134
    %v411 = vunpack.c.h.b16 %v134
    %v412 = vunpack.c.l.b16 %v135
    %v413 = vunpack.c.h.b16 %v135
    %v414 = vunpack.c.l.b16 %v136
    %v415 = vunpack.c.l.b16 %v137
    %v416 = vunpack.c.h.b16 %v137
    %v417 = vunpack.c.l.b16 %v138
    %v418 = vunpack.c.h.b16 %v138
    %v419 = vunpack.c.l.b16 %v139
    %v420 = vunpack.c.h.b16 %v139
    %v421 = vunpack.c.l.b16 %v140
    %v422 = vunpack.c.l.b16 %v141
    %v423 = vunpack.c.h.b16 %v141
    %v424 = vunpack.c.l.b16 %v142
    %v425 = vunpack.c.h.b16 %v142
    %v426 = vunpack.c.l.b16 %v143
    %v427 = vunpack.c.h.b16 %v143
    %v428 = vunpack.c.l.b16 %v144
    %v429 = vunpack.c.l.b16 %v145
    %v430 = vunpack.c.h.b16 %v145
    %v431 = vunpack.c.l.b16 %v146
    %v432 = vunpack.c.h.b16 %v146
    %v433 = vunpack.c.l.b16 %v147
    %v434 = vunpack.c.h.b16 %v147
    %v435 = vunpack.c.l.b16 %v148
    %v436 = vunpack.c.l.b16 %v149
    %v437 = vunpack.c.h.b16 %v149
    %v438 = vunpack.c.l.b16 %v150
    %v439 = vunpack.c.h.b16 %v150
    %v440 = vunpack.c.l.b16 %v151
    %v441 = vunpack.c.h.b16 %v151
    %v442 = vunpack.c.l.b16 %v152
    %v443 = vunpack.c.l.b16 %v153
    %v444 = vunpack.c.h.b16 %v153
    %v445 = vunpack.c.l.b16 %v154
    %v446 = vunpack.c.h.b16 %v154
    %v447 = vunpack.c.l.b16 %v155
    %v448 = vunpack.c.h.b16 %v155
    %v449 = vunpack.c.l.b16 %v156
    %v450 = vunpack.c.l.b16 %v157
    %v451 = vunpack.c.h.b16 %v157
    %v452 = vunpack.c.l.b16 %v158
    %v453 = vunpack.c.h.b16 %v158
    %v454 = vunpack.c.l.b16 %v159
    %v455 = vunpack.c.h.b16 %v159
    %v456 = vunpack.c.l.b16 %v160
    %v457 = vunpack.c.l.b16 %v161
    %v458 = vunpack.c.h.b16 %v161
    %v459 = vunpack.c.l.b16 %v162
    %v460 = vunpack.c.h.b16 %v162
    %v461 = vunpack.c.l.b16 %v163
    %v462 = vunpack.c.h.b16 %v163
    %v463 = vunpack.c.l.b16 %v164
    %v464 = vunpack.c.l.b16 %v165
    %v465 = vunpack.c.h.b16 %v165
    %v466 = vunpack.c.l.b16 %v166
    %v467 = vunpack.c.h.b16 %v166
    %v468 = vunpack.c.l.b16 %v167
    %v469 = vunpack.c.h.b16 %v167
    %v470 = vunpack.c.l.b16 %v168
    %v471 = vunpack.c.l.b16 %v169
    %v472 = vunpack.c.h.b16 %v169
    %v473 = vunpack.c.l.b16 %v170
    %v474 = vunpack.c.h.b16 %v170
    %v475 = vunpack.c.l.b16 %v171
    %v476 = vunpack.c.h.b16 %v171
    %v477 = vunpack.c.l.b16 %v172
    %v478 = vunpack.c.l.b16 %v173
    %v479 = vunpack.c.h.b16 %v173
    %v480 = vunpack.c.l.b16 %v174
    %v481 = vunpack.c.h.b16 %v174
    %v482 = vunpack.c.l.b16 %v175
    %v483 = vunpack.c.h.b16 %v175
    %v484 = vunpack.c.l.b16 %v176
    %v485 = vunpack.c.l.b16 %v177
    %v486 = vunpack.c.h.b16 %v177
    %v487 = vunpack.c.l.b16 %v178
    %v488 = vunpack.c.h.b16 %v178
    %v489 = vunpack.c.l.b16 %v179
    %v490 = vunpack.c.h.b16 %v179
    %v491 = vunpack.c.l.b16 %v180
    %v492 = vunpack.c.l.b16 %v181
    %v493 = vunpack.c.h.b16 %v181
    %v494 = vunpack.c.l.b16 %v182
    %v495 = vunpack.c.h.b16 %v182
    %v496 = vunpack.c.l.b16 %v183
    %v497 = vunpack.c.h.b16 %v183
    %v498 = vunpack.c.l.b16 %v184
    %v499 = vunpack.c.l.b16 %v185
    %v500 = vunpack.c.h.b16 %v185
    %v501 = vunpack.c.l.b16 %v186
    %v502 = vunpack.c.h.b16 %v186
    %v503 = vunpack.c.l.b16 %v187
    %v504 = vunpack.c.h.b16 %v187
    %v505 = vunpack.c.l.b16 %v188
    %v506 = vunpack.c.l.b16 %v189
    %v507 = vunpack.c.h.b16 %v189
    %v508 = vunpack.c.l.b16 %v190
    %v509 = vunpack.c.h.b16 %v190
    %v510 = vunpack.c.l.b16 %v191
    %v511 = vunpack.c.h.b16 %v191
    %v512 = vunpack.c.l.b16 %v192
    %v513 = vunpack.c.l.b16 %v193
    %v514 = vunpack.c.h.b16 %v193
    %v515 = vunpack.c.l.b16 %v194
    %v516 = vunpack.c.h.b16 %v194
    %v517 = vunpack.c.l.b16 %v195
    %v518 = vunpack.c.h.b16 %v195
    %v519 = vunpack.c.l.b16 %v196
    %v520 = vunpack.c.l.b16 %v197
    %v521 = vunpack.c.h.b16 %v197
    %v522 = vunpack.c.l.b16 %v198
    %v523 = vunpack.c.h.b16 %v198
    %v524 = vunpack.c.l.b16 %v199
    %v525 = vunpack.c.h.b16 %v199
    %v526 = vunpack.c.l.b16 %v200
    %v527 = vunpack.c.l.b16 %v201
    %v528 = vunpack.c.h.b16 %v201
    %v529 = vunpack.c.l.b16 %v202
    %v530 = vunpack.c.h.b16 %v202
    %v531 = vunpack.c.l.b16 %v203
    %v532 = vunpack.c.h.b16 %v203
    %v533 = vunpack.c.l.b16 %v204
    %v534 = vunpack.c.l.b16 %v205
    %v535 = vunpack.c.h.b16 %v205
    %v536 = vunpack.c.l.b16 %v206
    %v537 = vunpack.c.h.b16 %v206
    %v538 = vunpack.c.l.b16 %v207
    %v539 = vunpack.c.h.b16 %v207
    %v540 = vunpack.c.l.b16 %v208
    %v541 = vunpack.c.l.b16 %v209
    %v542 = vunpack.c.h.b16 %v209
    %v543 = vunpack.c.l.b16 %v210
    %v544 = vunpack.c.h.b16 %v210
    %v545 = vunpack.c.l.b16 %v211
    %v546 = vunpack.c.h.b16 %v211
    %v547 = vunpack.c.l.b16 %v212
    %v548 = vunpack.c.l.b16 %v213
    %v549 = vunpack.c.h.b16 %v213
    %v550 = vunpack.c.l.b16 %v214
    %v551 = vunpack.c.h.b16 %v214
    %v552 = vunpack.c.l.b16 %v215
    %v553 = vunpack.c.h.b16 %v215
    %v554 = vunpack.c.l.b16 %v216
    %v555 = vunpack.c.l.b16 %v217
    %v556 = vunpack.c.h.b16 %v217
    %v557 = vunpack.c.l.b16 %v218
    %v558 = vunpack.c.h.b16 %v218
    %v559 = vunpack.c.l.b16 %v219
    %v560 = vunpack.c.h.b16 %v219
    %v561 = vunpack.c.l.b16 %v220
    %v562 = vunpack.c.l.b16 %v221
    %v563 = vunpack.c.h.b16 %v221
    %v564 = vunpack.c.l.b16 %v222
    %v565 = vunpack.c.h.b16 %v222
    %v566 = vunpack.c.l.b16 %v223
    %v567 = vunpack.c.h.b16 %v223
    %v568 = vunpack.c.l.b16 %v224
    %v569 = vunpack.c.l.b16 %v225
    %v570 = vunpack.c.h.b16 %v225
    %v571 = vunpack.c.l.b16 %v226
    %v572 = vunpack.c.h.b16 %v226
    %v573 = vunpack.c.l.b16 %v227
    %v574 = vunpack.c.h.b16 %v227
    %v575 = vunpack.c.l.b16 %v228
    %v576 = vunpack.c.l.b16 %v229
    %v577 = vunpack.c.h.b16 %v229
    %v578 = vunpack.c.l.b16 %v230
    %v579 = vunpack.c.h.b16 %v230
    %v580 = vunpack.c.l.b16 %v231
    %v581 = vunpack.c.h.b16 %v231
    %v582 = vunpack.c.l.b16 %v232
    %v583 = vunpack.c.l.b16 %v233
    %v584 = vunpack.c.h.b16 %v233
    %v585 = vunpack.c.l.b16 %v234
    %v586 = vunpack.c.h.b16 %v234
    %v587 = vunpack.c.l.b16 %v235
    %v588 = vunpack.c.h.b16 %v235
    %v589 = vunpack.c.l.b16 %v236
    %v590 = vunpack.c.l.b16 %v237
    %v591 = vunpack.c.h.b16 %v237
    %v592 = vunpack.c.l.b16 %v238
    %v593 = vunpack.c.h.b16 %v238
    %v594 = vunpack.c.l.b16 %v239
    %v595 = vunpack.c.h.b16 %v239
    %v596 = vunpack.c.l.b16 %v240
    %v597 = vunpack.c.l.b16 %v241
    %v598 = vunpack.c.h.b16 %v241
    %v599 = vunpack.c.l.b16 %v242
    %v600 = vunpack.c.h.b16 %v242
    %v601 = vunpack.c.l.b16 %v243
    %v602 = vunpack.c.h.b16 %v243
    %v603 = vunpack.c.l.b16 %v244
    %v604 = vunpack.c.l.b16 %v245
    %v605 = vunpack.c.h.b16 %v245
    %v606 = vunpack.c.l.b16 %v246
    %v607 = vunpack.c.h.b16 %v246
    %v608 = vunpack.c.l.b16 %v247
    %v609 = vunpack.c.h.b16 %v247
    %v610 = vunpack.c.l.b16 %v248
    %v611 = vunpack.c.l.b16 %v249
    %v612 = vunpack.c.h.b16 %v249
    %v613 = vunpack.c.l.b16 %v250
    %v614 = vunpack.c.h.b16 %v250
    %v615 = vunpack.c.l.b16 %v251
    %v616 = vunpack.c.h.b16 %v251
    %v617 = vunpack.c.l.b16 %v252
    %v618 = vunpack.c.l.b16 %v253
    %v619 = vunpack.c.h.b16 %v253
    %v620 = vunpack.c.l.b16 %v254
    %v621 = vunpack.c.h.b16 %v254
    %v622 = vunpack.c.l.b16 %v255
    %v623 = vunpack.c.h.b16 %v255
    %v624 = vunpack.c.l.b16 %v256
    %v625 = vpack.c.b16 %v408, %v401
    %v626 = vpack.c.b16 %v409, %v402
    %v627 = vpack.c.b16 %v410, %v403
    %v628 = vpack.c.b16 %v411, %v404
    %v629 = vpack.c.b16 %v412, %v405
    %v630 = vpack.c.b16 %v413, %v406
    %v631 = vpack.c.b16 %v414, %v407
    %v632 = vpack.c.b16 %v422, %v415
    %v633 = vpack.c.b16 %v423, %v416
    %v634 = vpack.c.b16 %v424, %v417
    %v635 = vpack.c.b16 %v425, %v418
    %v636 = vpack.c.b16 %v426, %v419
    %v637 = vpack.c.b16 %v427, %v420
    %v638 = vpack.c.b16 %v428, %v421
    %v639 = vpack.c.b16 %v436, %v429
    %v640 = vpack.c.b16 %v437, %v430
    %v641 = vpack.c.b16 %v438, %v431
    %v642 = vpack.c.b16 %v439, %v432
    %v643 = vpack.c.b16 %v440, %v433
    %v644 = vpack.c.b16 %v441, %v434
    %v645 = vpack.c.b16 %v442, %v435
    %v646 = vpack.c.b16 %v450, %v443
    %v647 = vpack.c.b16 %v451, %v444
    %v648 = vpack.c.b16 %v452, %v445
    %v649 = vpack.c.b16 %v453, %v446
    %v650 = vpack.c.b16 %v454, %v447
    %v651 = vpack.c.b16 %v455, %v448
    %v652 = vpack.c.b16 %v456, %v449
    %v653 = vpack.c.b16 %v464, %v457
    %v654 = vpack.c.b16 %v465, %v458
    %v655 = vpack.c.b16 %v466, %v459
    %v656 = vpack.c.b16 %v467, %v460
    %v657 = vpack.c.b16 %v468, %v461
    %v658 = vpack.c.b16 %v469, %v462
    %v659 = vpack.c.b16 %v470, %v463
    %v660 = vpack.c.b16 %v478, %v471
    %v661 = vpack.c.b16 %v479, %v472
    %v662 = vpack.c.b16 %v480, %v473
    %v663 = vpack.c.b16 %v481, %v474
    %v664 = vpack.c.b16 %v482, %v475
    %v665 = vpack.c.b16 %v483, %v476
    %v666 = vpack.c.b16 %v484, %v477
    %v667 = vpack.c.b16 %v492, %v485
    %v668 = vpack.c.b16 %v493, %v486
    %v669 = vpack.c.b16 %v494, %v487
    %v670 = vpack.c.b16 %v495, %v488
    %v671 = vpack.c.b16 %v496, %v489
    %v672 = vpack.c.b16 %v497, %v490
    %v673 = vpack.c.b16 %v498, %v491
    %v674 = vpack.c.b16 %v506, %v499
    %v675 = vpack.c.b16 %v507, %v500
    %v676 = vpack.c.b16 %v508, %v501
    %v677 = vpack.c.b16 %v509, %v502
    %v678 = vpack.c.b16 %v510, %v503
    %v679 = vpack.c.b16 %v511, %v504
    %v680 = vpack.c.b16 %v512, %v505
    %v681 = vpack.c.b16 %v520, %v513
    %v682 = vpack.c.b16 %v521, %v514
    %v683 = vpack.c.b16 %v522, %v515
    %v684 = vpack.c.b16 %v523, %v516
    %v685 = vpack.c.b16 %v524, %v517
    %v686 = vpack.c.b16 %v525, %v518
    %v687 = vpack.c.b16 %v526, %v519
    %v688 = vpack.c.b16 %v534, %v527
    %v689 = vpack.c.b16 %v535, %v528
    %v690 = vpack.c.b16 %v536, %v529
    %v691 = vpack.c.b16 %v537, %v530
    %v692 = vpack.c.b16 %v538, %v531
    %v693 = vpack.c.b16 %v539, %v532
    %v694 = vpack.c.b16 %v540, %v533
    %v695 = vpack.c.b16 %v548, %v541
    %v696 = vpack.c.b16 %v549, %v542
    %v697 = vpack.c.b16 %v550, %v543
    %v698 = vpack.c.b16 %v551, %v544
    %v699 = vpack.c.b16 %v552, %v545
    %v700 = vpack.c.b16 %v553, %v546
    %v701 = vpack.c.b16 %v554, %v547
    %v702 = vpack.c.b16 %v562, %v555
    %v703 = vpack.c.b16 %v563, %v556
    %v704 = vpack.c.b16 %v564, %v557
    %v705 = vpack.c.b16 %v565, %v558
    %v706 = vpack.c.b16 %v566, %v559
    %v707 = vpack.c.b16 %v567, %v560
    %v708 = vpack.c.b16 %v568, %v561
    %v709 = vpack.c.b16 %v576, %v569
    %v710 = vpack.c.b16 %v577, %v570
    %v711 = vpack.c.b16 %v578, %v571
    %v712 = vpack.c.b16 %v579, %v572
    %v713 = vpack.c.b16 %v580, %v573
    %v714 = vpack.c.b16 %v581, %v574
    %v715 = vpack.c.b16 %v582, %v575
    %v716 = vpack.c.b16 %v590, %v583
    %v717 = vpack.c.b16 %v591, %v584
    %v718 = vpack.c.b16 %v592, %v585
    %v719 = vpack.c.b16 %v593, %v586
    %v720 = vpack.c.b16 %v594, %v587
    %v721 = vpack.c.b16 %v595, %v588
    %v722 = vpack.c.b16 %v596, %v589
    %v723 = vpack.c.b16 %v604, %v597
    %v724 = vpack.c.b16 %v605, %v598
    %v725 = vpack.c.b16 %v606, %v599
    %v726 = vpack.c.b16 %v607, %v600
    %v727 = vpack.c.b16 %v608, %v601
    %v728 = vpack.c.b16 %v609, %v602
    %v729 = vpack.c.b16 %v610, %v603
    %v730 = vpack.c.b16 %v618, %v611
    %v731 = vpack.c.b16 %v619, %v612
    %v732 = vpack.c.b16 %v620, %v613
    %v733 = vpack.c.b16 %v621, %v614
    %v734 = vpack.c.b16 %v622, %v615
    %v735 = vpack.c.b16 %v623, %v616
    %v736 = vpack.c.b16 %v624, %v617
    %849 = vmatpush.bf16.msra.mxu0 %v674
    %850 = vmatpush.bf16.msra.mxu0 %v667
    %851 = vmatpush.bf16.msra.mxu0 %v660
    %852 = vmatpush.bf16.msra.mxu0 %v653
    %853 = vmatpush.bf16.msra.mxu0 %v646
    %854 = vmatpush.bf16.msra.mxu0 %v639
    %855 = vmatpush.bf16.msra.mxu0 %v632
    %856 = vmatpush.bf16.msra.mxu0 %v625
    %857 = vmatmul.bf16.gmra.mxu0 %v127
    %v858 = vpop.f32.mrf.mxu0
    %v859 = vadd.f32 %v259, %v858
    %v860 = vpop.f32.mrf.mxu0
    %v861 = vadd.f32 %v259, %v860
    %862 = vdwg.mxu0
    %863 = vmatpush.bf16.msra.mxu0 %v730
    %864 = vmatpush.bf16.msra.mxu0 %v723
    %865 = vmatpush.bf16.msra.mxu0 %v716
    %866 = vmatpush.bf16.msra.mxu0 %v709
    %867 = vmatpush.bf16.msra.mxu0 %v702
    %868 = vmatpush.bf16.msra.mxu0 %v695
    %869 = vmatpush.bf16.msra.mxu0 %v688
    %870 = vmatpush.bf16.msra.mxu0 %v681
    %871 = vmatmul.bf16.gmra.mxu0 %v128
    %v872 = vpop.f32.mrf.mxu0
    %v873 = vadd.f32 %v859, %v872
    %v874 = vpop.f32.mrf.mxu0
    %v875 = vadd.f32 %v861, %v874
    %876 = vdwg.mxu0
    %877 = vmatpush.bf16.msra.mxu0 %v675
    %878 = vmatpush.bf16.msra.mxu0 %v668
    %879 = vmatpush.bf16.msra.mxu0 %v661
    %880 = vmatpush.bf16.msra.mxu0 %v654
    %881 = vmatpush.bf16.msra.mxu0 %v647
    %882 = vmatpush.bf16.msra.mxu0 %v640
    %883 = vmatpush.bf16.msra.mxu0 %v633
    %884 = vmatpush.bf16.msra.mxu0 %v626
    %885 = vmatmul.bf16.gmra.mxu0 %v127
    %v886 = vpop.f32.mrf.mxu0
    %v887 = vadd.f32 %v260, %v886
    %v888 = vpop.f32.mrf.mxu0
    %v889 = vadd.f32 %v260, %v888
    %890 = vdwg.mxu0
    %891 = vmatpush.bf16.msra.mxu0 %v731
    %892 = vmatpush.bf16.msra.mxu0 %v724
    %893 = vmatpush.bf16.msra.mxu0 %v717
    %894 = vmatpush.bf16.msra.mxu0 %v710
    %895 = vmatpush.bf16.msra.mxu0 %v703
    %896 = vmatpush.bf16.msra.mxu0 %v696
    %897 = vmatpush.bf16.msra.mxu0 %v689
    %898 = vmatpush.bf16.msra.mxu0 %v682
    %899 = vmatmul.bf16.gmra.mxu0 %v128
    %v900 = vpop.f32.mrf.mxu0
    %v901 = vadd.f32 %v887, %v900
    %v902 = vpop.f32.mrf.mxu0
    %v903 = vadd.f32 %v889, %v902
    %904 = vdwg.mxu0
    %905 = vmatpush.bf16.msra.mxu0 %v676
    %906 = vmatpush.bf16.msra.mxu0 %v669
    %907 = vmatpush.bf16.msra.mxu0 %v662
    %908 = vmatpush.bf16.msra.mxu0 %v655
    %909 = vmatpush.bf16.msra.mxu0 %v648
    %910 = vmatpush.bf16.msra.mxu0 %v641
    %911 = vmatpush.bf16.msra.mxu0 %v634
    %912 = vmatpush.bf16.msra.mxu0 %v627
    %913 = vmatmul.bf16.gmra.mxu0 %v127
    %v914 = vpop.f32.mrf.mxu0
    %v915 = vadd.f32 %v261, %v914
    %v916 = vpop.f32.mrf.mxu0
    %v917 = vadd.f32 %v261, %v916
    %918 = vdwg.mxu0
    %919 = vmatpush.bf16.msra.mxu0 %v732
    %920 = vmatpush.bf16.msra.mxu0 %v725
    %921 = vmatpush.bf16.msra.mxu0 %v718
    %922 = vmatpush.bf16.msra.mxu0 %v711
    %923 = vmatpush.bf16.msra.mxu0 %v704
    %924 = vmatpush.bf16.msra.mxu0 %v697
    %925 = vmatpush.bf16.msra.mxu0 %v690
    %926 = vmatpush.bf16.msra.mxu0 %v683
    %927 = vmatmul.bf16.gmra.mxu0 %v128
    %v928 = vpop.f32.mrf.mxu0
    %v929 = vadd.f32 %v915, %v928
    %v930 = vpop.f32.mrf.mxu0
    %v931 = vadd.f32 %v917, %v930
    %932 = vdwg.mxu0
    %933 = vmatpush.bf16.msra.mxu0 %v677
    %934 = vmatpush.bf16.msra.mxu0 %v670
    %935 = vmatpush.bf16.msra.mxu0 %v663
    %936 = vmatpush.bf16.msra.mxu0 %v656
    %937 = vmatpush.bf16.msra.mxu0 %v649
    %938 = vmatpush.bf16.msra.mxu0 %v642
    %939 = vmatpush.bf16.msra.mxu0 %v635
    %940 = vmatpush.bf16.msra.mxu0 %v628
    %941 = vmatmul.bf16.gmra.mxu0 %v127
    %v942 = vpop.f32.mrf.mxu0
    %v943 = vadd.f32 %v262, %v942
    %v944 = vpop.f32.mrf.mxu0
    %v945 = vadd.f32 %v262, %v944
    %946 = vdwg.mxu0
    %947 = vmatpush.bf16.msra.mxu0 %v733
    %948 = vmatpush.bf16.msra.mxu0 %v726
    %949 = vmatpush.bf16.msra.mxu0 %v719
    %950 = vmatpush.bf16.msra.mxu0 %v712
    %951 = vmatpush.bf16.msra.mxu0 %v705
    %952 = vmatpush.bf16.msra.mxu0 %v698
    %953 = vmatpush.bf16.msra.mxu0 %v691
    %954 = vmatpush.bf16.msra.mxu0 %v684
    %955 = vmatmul.bf16.gmra.mxu0 %v128
    %v956 = vpop.f32.mrf.mxu0
    %v957 = vadd.f32 %v943, %v956
    %v958 = vpop.f32.mrf.mxu0
    %v959 = vadd.f32 %v945, %v958
    %960 = vdwg.mxu0
    %961 = vmatpush.bf16.msra.mxu0 %v678
    %962 = vmatpush.bf16.msra.mxu0 %v671
    %963 = vmatpush.bf16.msra.mxu0 %v664
    %964 = vmatpush.bf16.msra.mxu0 %v657
    %965 = vmatpush.bf16.msra.mxu0 %v650
    %966 = vmatpush.bf16.msra.mxu0 %v643
    %967 = vmatpush.bf16.msra.mxu0 %v636
    %968 = vmatpush.bf16.msra.mxu0 %v629
    %969 = vmatmul.bf16.gmra.mxu0 %v127
    %v970 = vpop.f32.mrf.mxu0
    %v971 = vadd.f32 %v263, %v970
    %v972 = vpop.f32.mrf.mxu0
    %v973 = vadd.f32 %v263, %v972
    %974 = vdwg.mxu0
    %975 = vmatpush.bf16.msra.mxu0 %v734
    %976 = vmatpush.bf16.msra.mxu0 %v727
    %977 = vmatpush.bf16.msra.mxu0 %v720
    %978 = vmatpush.bf16.msra.mxu0 %v713
    %979 = vmatpush.bf16.msra.mxu0 %v706
    %980 = vmatpush.bf16.msra.mxu0 %v699
    %981 = vmatpush.bf16.msra.mxu0 %v692
    %982 = vmatpush.bf16.msra.mxu0 %v685
    %983 = vmatmul.bf16.gmra.mxu0 %v128
    %v984 = vpop.f32.mrf.mxu0
    %v985 = vadd.f32 %v971, %v984
    %v986 = vpop.f32.mrf.mxu0
    %v987 = vadd.f32 %v973, %v986
    %988 = vdwg.mxu0
    %989 = vmatpush.bf16.msra.mxu0 %v679
    %990 = vmatpush.bf16.msra.mxu0 %v672
    %991 = vmatpush.bf16.msra.mxu0 %v665
    %992 = vmatpush.bf16.msra.mxu0 %v658
    %993 = vmatpush.bf16.msra.mxu0 %v651
    %994 = vmatpush.bf16.msra.mxu0 %v644
    %995 = vmatpush.bf16.msra.mxu0 %v637
    %996 = vmatpush.bf16.msra.mxu0 %v630
    %997 = vmatmul.bf16.gmra.mxu0 %v127
    %v998 = vpop.f32.mrf.mxu0
    %v999 = vadd.f32 %v264, %v998
    %v1000 = vpop.f32.mrf.mxu0
    %v1001 = vadd.f32 %v264, %v1000
    %1002 = vdwg.mxu0
    %1003 = vmatpush.bf16.msra.mxu0 %v735
    %1004 = vmatpush.bf16.msra.mxu0 %v728
    %1005 = vmatpush.bf16.msra.mxu0 %v721
    %1006 = vmatpush.bf16.msra.mxu0 %v714
    %1007 = vmatpush.bf16.msra.mxu0 %v707
    %1008 = vmatpush.bf16.msra.mxu0 %v700
    %1009 = vmatpush.bf16.msra.mxu0 %v693
    %1010 = vmatpush.bf16.msra.mxu0 %v686
    %1011 = vmatmul.bf16.gmra.mxu0 %v128
    %v1012 = vpop.f32.mrf.mxu0
    %v1013 = vadd.f32 %v999, %v1012
    %v1014 = vpop.f32.mrf.mxu0
    %v1015 = vadd.f32 %v1001, %v1014
    %1016 = vdwg.mxu0
    %1017 = vmatpush.bf16.msra.mxu0 %v680
    %1018 = vmatpush.bf16.msra.mxu0 %v673
    %1019 = vmatpush.bf16.msra.mxu0 %v666
    %1020 = vmatpush.bf16.msra.mxu0 %v659
    %1021 = vmatpush.bf16.msra.mxu0 %v652
    %1022 = vmatpush.bf16.msra.mxu0 %v645
    %1023 = vmatpush.bf16.msra.mxu0 %v638
    %1024 = vmatpush.bf16.msra.mxu0 %v631
    %1025 = vmatmul.bf16.gmra.mxu0 %v127
    %v1026 = vpop.f32.mrf.mxu0
    %v1027 = vadd.f32 %v265, %v1026
    %v1028 = vpop.f32.mrf.mxu0
    %v1029 = vadd.f32 %v265, %v1028
    %1030 = vdwg.mxu0
    %1031 = vmatpush.bf16.msra.mxu0 %v736
    %1032 = vmatpush.bf16.msra.mxu0 %v729
    %1033 = vmatpush.bf16.msra.mxu0 %v722
    %1034 = vmatpush.bf16.msra.mxu0 %v715
    %1035 = vmatpush.bf16.msra.mxu0 %v708
    %1036 = vmatpush.bf16.msra.mxu0 %v701
    %1037 = vmatpush.bf16.msra.mxu0 %v694
    %1038 = vmatpush.bf16.msra.mxu0 %v687
    %1039 = vmatmul.bf16.gmra.mxu0 %v128
    %v1040 = vpop.f32.mrf.mxu0
    %v1041 = vadd.f32 %v1027, %v1040
    %v1042 = vpop.f32.mrf.mxu0
    %v1043 = vadd.f32 %v1029, %v1042
    %1044 = vdwg.mxu0
    %v1045 = vtanh.pop %v873
    %v1046 = vtanh.pop %v901
    %v1047 = vtanh.pop %v929
    %v1048 = vtanh.pop %v957
    %v1049 = vtanh.pop %v985
    %v1050 = vtanh.pop %v1013
    %v1051 = vtanh.pop %v1041
    %v1052 = vtanh.pop %v875
    %v1053 = vtanh.pop %v903
    %v1054 = vtanh.pop %v931
    %v1055 = vtanh.pop %v959
    %v1056 = vtanh.pop %v987
    %v1057 = vtanh.pop %v1015
    %v1058 = vtanh.pop %v1043
    %1059 = vst [vmem:[#allocation2] sm:$0xff] %v1045
    %1060 = vst [vmem:[#allocation2 + $0x8] sm:$0xff] %v1046
    %1061 = vst [vmem:[#allocation2 + $0x10] sm:$0xff] %v1047
    %1062 = vst [vmem:[#allocation2 + $0x18] sm:$0xff] %v1048
    %1063 = vst [vmem:[#allocation2 + $0x20] sm:$0xff] %v1049
    %1064 = vst [vmem:[#allocation2 + $0x28] sm:$0xff] %v1050
    %1065 = vst [vmem:[#allocation2 + $0x30] sm:$0xff] %v1051
    %1066 = vst [vmem:[#allocation2 + $0x38] sm:$0xff] %v1052
    %1067 = vst [vmem:[#allocation2 + $0x40] sm:$0xff] %v1053
    %1068 = vst [vmem:[#allocation2 + $0x48] sm:$0xff] %v1054
    %1069 = vst [vmem:[#allocation2 + $0x50] sm:$0xff] %v1055
    %1070 = vst [vmem:[#allocation2 + $0x58] sm:$0xff] %v1056
    %1071 = vst [vmem:[#allocation2 + $0x60] sm:$0xff] %v1057
    %1072 = vst [vmem:[#allocation2 + $0x68] sm:$0xff] %v1058
    // Predicated region
    $region22: #{generator_forward.1} parent=1 // pred_check
      _
    $region23: #{generator_forward.1} parent=1 // pred_check_branch
      %1074 = sbr.rel (0) target = $region25
    $region24: #{generator_forward.1} parent=1 // pred_region
      %1076 = vsyncadd [#allocation3], 0
      %s1077 = sshll.u32 [#allocation2], 4
      %s1078 = int_to_ptr.vmem [resolvable:$true] %s1077
      %s1079 = sshll.u32 %s5, 4
      %s1080 = int_to_ptr.hbm [resolvable:$true] %s1079
      %1085 = dma.vmem_to_hbm [thread:$0]  %s1078, 1792, %s1080, [#allocation3], 896, 896, 56
    $region25: #{generator_forward.1} parent=1 // pred_fallthru
      _
    // Predicated region
    $region26: #{generator_forward.1} parent=1 // pred_check
      _
    $region27: #{generator_forward.1} parent=1 // pred_check_branch
      %1087 = sbr.rel (0) target = $region29
    $region28: #{generator_forward.1} parent=1 // pred_region
      %1089 = dma.done [#allocation3], 1792
    $region29: #{generator_forward.1} parent=1 // pred_fallthru
      _
    %1090 = vsyncpa [#allocation3], 1

</llo_original>
